<compile_context>
chip_gen: v7x
topology: tpu7x:2x2x1
jax: 0.10.0
libtpu: 0.0.40
codegen_flags: <defaults>
</compile_context>

<pallas_src>
from functools import partial

import jax
import jax.numpy as jnp
from jax.experimental import pallas as pl
from jax.experimental.pallas import tpu as pltpu


_BN_EPS = 1e-5
_LEAKY_SLOPE = 0.01


def _round_up(x, m):
    return ((x + m - 1) // m) * m


def _cdiv(a, b):
    return -(-a // b)


def _default_vmem_limit():
    """Per-chip scoped-VMEM budget: ~half of physical VMEM, capped at 100 MiB."""
    try:
        cap = int(pltpu.get_tpu_info().vmem_capacity_bytes)
    except Exception:
        cap = 64 * 1024 * 1024
    return max(16 * 1024 * 1024, min(100 * 1024 * 1024, cap // 2))


# ---------------------------------------------------------------------------
# Shared kernel building blocks
# ---------------------------------------------------------------------------
def _first_matmul_masked(x_ref, w1_ref, row0, tile_b, n_rows, mm_dtype):
    """h = x @ W1 for one batch tile; rows >= n_rows (ragged padding) zeroed."""
    x = x_ref[...].astype(mm_dtype)
    h = jnp.dot(x, w1_ref[...], preferred_element_type=jnp.float32)
    rows = row0 + jax.lax.broadcasted_iota(jnp.int32, (tile_b, 1), 0)
    return jnp.where(rows < n_rows, h, 0.0)


def _fold_bn(s, ss, gamma, beta, inv_b):
    """Fold training-mode BatchNorm into per-feature (1, Dp) scale/shift."""
    mean = s * inv_b
    var = jnp.maximum(ss * inv_b - mean * mean, 0.0)      # biased variance
    scale = gamma * jax.lax.rsqrt(var + _BN_EPS)
    return scale, beta - mean * scale


def _bn_act_linear2(h, scale, shift, w2_ref, b2_ref, o_ref):
    """BN affine + LeakyReLU + second Linear, written to the output tile."""
    h = h * scale + shift
    h = jnp.maximum(h, _LEAKY_SLOPE * h)                  # LeakyReLU(0.01), 1 VPU op
    out = jnp.dot(h.astype(w2_ref.dtype), w2_ref[...],
                  preferred_element_type=jnp.float32) + b2_ref[...]
    o_ref[...] = out.astype(o_ref.dtype)


# ---------------------------------------------------------------------------
# Fused single-kernel path: grid = (2 phases, n_batch_tiles).
#   phase 0: h tile -> VMEM scratch + stats accumulation.
#   phase 1: fold BN once (i == 0), then normalize / activate / Linear 2.
# ---------------------------------------------------------------------------
def _fused_kernel(x_ref, w1_ref, gamma_ref, beta_ref, w2_ref, b2_ref, o_ref,
                  h_scr, sum_scr, sumsq_scr, scale_scr, shift_scr,
                  *, n_rows, tile_b, inv_b, mm_dtype):
    phase = pl.program_id(0)
    i = pl.program_id(1)
    row0 = pl.multiple_of(i * tile_b, 8)

    @pl.when(phase == 0)
    def _():
        @pl.when(i == 0)
        def _():
            sum_scr[...] = jnp.zeros_like(sum_scr)
            sumsq_scr[...] = jnp.zeros_like(sumsq_scr)

        h = _first_matmul_masked(x_ref, w1_ref, row0, tile_b, n_rows, mm_dtype)
        h_scr[pl.ds(row0, tile_b), :] = h
        sum_scr[...] += jnp.sum(h, axis=0, keepdims=True)
        sumsq_scr[...] += jnp.sum(h * h, axis=0, keepdims=True)

    @pl.when(phase == 1)
    def _():
        @pl.when(i == 0)
        def _():
            scale, shift = _fold_bn(sum_scr[...], sumsq_scr[...],
                                    gamma_ref[...], beta_ref[...], inv_b)
            scale_scr[...] = scale
            shift_scr[...] = shift

        h = h_scr[pl.ds(row0, tile_b), :]
        _bn_act_linear2(h, scale_scr[...], shift_scr[...], w2_ref, b2_ref, o_ref)


# ---------------------------------------------------------------------------
# Two-pass fallback (only when the resident h scratch does not fit VMEM).
# ---------------------------------------------------------------------------
def _stats_kernel(x_ref, w1_ref, sum_ref, sumsq_ref, *, n_rows, tile_b, mm_dtype):
    i = pl.program_id(0)

    @pl.when(i == 0)
    def _():
        sum_ref[...] = jnp.zeros_like(sum_ref)
        sumsq_ref[...] = jnp.zeros_like(sumsq_ref)

    h = _first_matmul_masked(x_ref, w1_ref, i * tile_b, tile_b, n_rows, mm_dtype)
    sum_ref[...] += jnp.sum(h, axis=0, keepdims=True)
    sumsq_ref[...] += jnp.sum(h * h, axis=0, keepdims=True)


def _encode_kernel(x_ref, w1_ref, sum_ref, sumsq_ref, gamma_ref, beta_ref,
                   w2_ref, b2_ref, o_ref, *, n_rows, tile_b, inv_b, mm_dtype):
    i = pl.program_id(0)
    h = _first_matmul_masked(x_ref, w1_ref, i * tile_b, tile_b, n_rows, mm_dtype)
    # (1, Dp) BN fold recomputed per tile: negligible work (rsqrt -> EUP slot),
    # keeps the fold off the XLA critical path between the two pallas_calls.
    scale, shift = _fold_bn(sum_ref[...], sumsq_ref[...],
                            gamma_ref[...], beta_ref[...], inv_b)
    _bn_act_linear2(h, scale, shift, w2_ref, b2_ref, o_ref)


# ---------------------------------------------------------------------------
# One-time parameter preparation (hoisted out of the per-step forward).
# ---------------------------------------------------------------------------
def prepare_params(w1, b1, gamma, beta, w2, b2, matmul_dtype=jnp.bfloat16):
    """Pad the feature axis to a multiple of 128 (lane-dense) and cast the
    matmul weights once.  w1: (state_dim, repr_dim), w2: (repr_dim, repr_dim)
    (pre-transposed vs. PyTorch's (out, in)); b1/gamma/beta/b2: (1, repr_dim)."""
    del b1  # Cancelled exactly by training-mode BatchNorm mean subtraction.
    S, D = w1.shape
    Dp = max(128, _round_up(D, 128))
    f32 = jnp.float32
    w1p = jnp.zeros((S, Dp), matmul_dtype).at[:, :D].set(w1.astype(matmul_dtype))
    w2p = jnp.zeros((Dp, Dp), matmul_dtype).at[:D, :D].set(w2.astype(matmul_dtype))
    gammap = jnp.zeros((1, Dp), f32).at[:, :D].set(jnp.reshape(gamma, (1, D)).astype(f32))
    betap = jnp.zeros((1, Dp), f32).at[:, :D].set(jnp.reshape(beta, (1, D)).astype(f32))
    b2p = jnp.zeros((1, Dp), f32).at[:, :D].set(jnp.reshape(b2, (1, D)).astype(f32))
    return w1p, gammap, betap, w2p, b2p


# ---------------------------------------------------------------------------
# Forward pass
# ---------------------------------------------------------------------------
@partial(jax.jit, static_argnames=("repr_dim", "block_b", "out_dtype",
                                   "vmem_limit_bytes", "force_two_pass"))
def encoder_forward(state, w1p, gammap, betap, w2p, b2p, *, repr_dim,
                    block_b=1024, out_dtype=None, vmem_limit_bytes=None,
                    force_two_pass=False):
    """Encoder forward.  `state`: (B, state_dim); padded params from
    prepare_params().  Returns (B, repr_dim) in `out_dtype` (default: state's)."""
    B, S = state.shape
    Dp = w1p.shape[1]
    D = repr_dim
    mm_dtype = w1p.dtype
    out_dtype = state.dtype if out_dtype is None else out_dtype
    vmem_limit = (_default_vmem_limit() if vmem_limit_bytes is None
                  else vmem_limit_bytes)

    x_item = jnp.dtype(state.dtype).itemsize
    out_item = jnp.dtype(out_dtype).itemsize
    w_item = jnp.dtype(mm_dtype).itemsize

    # Balanced batch tiles; 16-row alignment if a 2-byte ref carries the batch
    # axis (bf16 sublane packing), else 8.
    align = 16 if min(x_item, out_item) <= 2 else 8
    n_tiles = max(1, _cdiv(B, block_b))
    tile_b = _round_up(_cdiv(B, n_tiles), align)

    def _per_step_bytes(tb):
        return (2 * tb * (S * x_item + Dp * out_item)       # 2-buffered x / out tiles
                + 2 * (S * Dp + Dp * Dp) * w_item           # 2-buffered weights
                + 16 * Dp * 4)                               # row buffers / slack
    while tile_b > align and _per_step_bytes(tile_b) > int(0.85 * vmem_limit):
        tile_b = max(align, _round_up(tile_b // 2, align))
    n_tiles = _cdiv(B, tile_b)
    Bp = n_tiles * tile_b
    inv_b = 1.0 / B

    # Fused path needs the whole (Bp, Dp) f32 h intermediate resident in VMEM.
    use_fused = (not force_two_pass) and (
        _per_step_bytes(tile_b) + Bp * Dp * 4 <= int(0.85 * vmem_limit))

    if use_fused:
        kern = partial(_fused_kernel, n_rows=B, tile_b=tile_b, inv_b=inv_b,
                       mm_dtype=mm_dtype)
        out_p = pl.pallas_call(
            kern,
            out_shape=jax.ShapeDtypeStruct((B, Dp), out_dtype),
            grid_spec=pltpu.PrefetchScalarGridSpec(
                num_scalar_prefetch=0,
                grid=(2, n_tiles),
                in_specs=[
                    # x only advances in phase 0 (phase 1 reads the h scratch;
                    # constant block index -> its DMA is skipped).
                    pl.BlockSpec((tile_b, S), lambda p, i: (i * (1 - p), 0)),
                    pl.BlockSpec((S, Dp), lambda p, i: (0, 0)),
                    pl.BlockSpec((1, Dp), lambda p, i: (0, 0)),
                    pl.BlockSpec((1, Dp), lambda p, i: (0, 0)),
                    pl.BlockSpec((Dp, Dp), lambda p, i: (0, 0)),
                    pl.BlockSpec((1, Dp), lambda p, i: (0, 0)),
                ],
                # Output block only advances in phase 1, so nothing is flushed
                # to HBM during the stats phase.
                out_specs=pl.BlockSpec((tile_b, Dp), lambda p, i: (i * p, 0)),
                scratch_shapes=[
                    pltpu.VMEM((Bp, Dp), jnp.float32),   # resident h
                    pltpu.VMEM((1, Dp), jnp.float32),    # sum
                    pltpu.VMEM((1, Dp), jnp.float32),    # sum of squares
                    pltpu.VMEM((1, Dp), jnp.float32),    # folded BN scale
                    pltpu.VMEM((1, Dp), jnp.float32),    # folded BN shift
                ]),
            compiler_params=pltpu.CompilerParams(
                dimension_semantics=("arbitrary", "arbitrary"),
                vmem_limit_bytes=vmem_limit),
        )(state, w1p, gammap, betap, w2p, b2p)
    else:
        # ---- Pass 1: batch statistics (accumulator outputs, pl.when init) ----
        h_sum, h_sumsq = pl.pallas_call(
            partial(_stats_kernel, n_rows=B, tile_b=tile_b, mm_dtype=mm_dtype),
            out_shape=(jax.ShapeDtypeStruct((1, Dp), jnp.float32),
                       jax.ShapeDtypeStruct((1, Dp), jnp.float32)),
            grid_spec=pltpu.PrefetchScalarGridSpec(
                num_scalar_prefetch=0,
                grid=(n_tiles,),
                in_specs=[pl.BlockSpec((tile_b, S), lambda i: (i, 0)),
                          pl.BlockSpec((S, Dp), lambda i: (0, 0))],
                out_specs=[pl.BlockSpec((1, Dp), lambda i: (0, 0)),
                           pl.BlockSpec((1, Dp), lambda i: (0, 0))]),
            compiler_params=pltpu.CompilerParams(
                dimension_semantics=("arbitrary",),
                vmem_limit_bytes=vmem_limit),
        )(state, w1p)

        # ---- Pass 2: recompute h, fold BN in-kernel, activate, Linear 2 ------
        out_p = pl.pallas_call(
            partial(_encode_kernel, n_rows=B, tile_b=tile_b, inv_b=inv_b,
                    mm_dtype=mm_dtype),
            out_shape=jax.ShapeDtypeStruct((B, Dp), out_dtype),
            grid_spec=pltpu.PrefetchScalarGridSpec(
                num_scalar_prefetch=0,
                grid=(n_tiles,),
                in_specs=[pl.BlockSpec((tile_b, S), lambda i: (i, 0)),
                          pl.BlockSpec((S, Dp), lambda i: (0, 0)),
                          pl.BlockSpec((1, Dp), lambda i: (0, 0)),
                          pl.BlockSpec((1, Dp), lambda i: (0, 0)),
                          pl.BlockSpec((1, Dp), lambda i: (0, 0)),
                          pl.BlockSpec((1, Dp), lambda i: (0, 0)),
                          pl.BlockSpec((Dp, Dp), lambda i: (0, 0)),
                          pl.BlockSpec((1, Dp), lambda i: (0, 0))],
                out_specs=pl.BlockSpec((tile_b, Dp), lambda i: (i, 0))),
            compiler_params=pltpu.CompilerParams(
                dimension_semantics=("parallel",),
                vmem_limit_bytes=vmem_limit),
        )(state, w1p, h_sum, h_sumsq, gammap, betap, w2p, b2p)

    return out_p[:, :D] if D != Dp else out_p


# ---------------------------------------------------------------------------
# Synthetic parameters + references
# ---------------------------------------------------------------------------
def init_params(key, state_dim, repr_dim):
    """Deterministic synthetic parameters (stand-in for utils.weight_init)."""
    k1, k2, k3, k4, k5 = jax.random.split(key, 5)
    w1 = jax.random.normal(k1, (state_dim, repr_dim), jnp.float32) / jnp.sqrt(state_dim)
    b1 = 0.1 * jax.random.normal(k3, (1, repr_dim), jnp.float32)   # cancelled by BN
    gamma = 1.0 + 0.1 * jax.random.normal(k4, (1, repr_dim), jnp.float32)
    beta = 0.1 * jax.random.normal(k5, (1, repr_dim), jnp.float32)
    w2 = jax.random.normal(k2, (repr_dim, repr_dim), jnp.float32) / jnp.sqrt(repr_dim)
    b2 = jnp.zeros((1, repr_dim), jnp.float32)
    return w1, b1, gamma, beta, w2, b2


def _reference(state, w1, b1, gamma, beta, w2, b2):
    """Pure-JAX reference matching PyTorch training-mode semantics (b1 included)."""
    h = state @ w1 + b1
    mean = h.mean(axis=0, keepdims=True)
    var = ((h - mean) ** 2).mean(axis=0, keepdims=True)
    h = (h - mean) / jnp.sqrt(var + _BN_EPS) * gamma + beta
    h = jnp.where(h >= 0.0, h, _LEAKY_SLOPE * h)
    return h @ w2 + b2


def _reference_emulated(state, w1, b1, gamma, beta, w2, b2, mm_dtype):
    """Mirrors the kernel numerics: b1 dropped (cancelled by training-mode BN),
    matmul inputs rounded to mm_dtype with f32 accumulation."""
    del b1
    h = jnp.dot(state.astype(mm_dtype), w1.astype(mm_dtype),
                preferred_element_type=jnp.float32)
    mean = h.mean(axis=0, keepdims=True)
    var = jnp.maximum((h * h).mean(axis=0, keepdims=True) - mean * mean, 0.0)
    scale = gamma * jax.lax.rsqrt(var + _BN_EPS)
    h = h * scale + (beta - mean * scale)
    h = jnp.maximum(h, _LEAKY_SLOPE * h)
    return jnp.dot(h.astype(mm_dtype), w2.astype(mm_dtype),
                   preferred_element_type=jnp.float32) + b2


if __name__ == "__main__":
    key = jax.random.PRNGKey(0)
    k_x, k_p = jax.random.split(key)

    B, state_dim, repr_dim = 8, 32, 64
    state = jax.random.normal(k_x, (B, state_dim), jnp.float32)
    params = init_params(k_p, state_dim, repr_dim)
    ref = _reference(state, *params)

    # ---- exact f32 path (fused single kernel) -----------------------------
    p32 = prepare_params(*params, matmul_dtype=jnp.float32)
    out_f32 = jax.block_until_ready(
        encoder_forward(state, *p32, repr_dim=repr_dim))
    assert out_f32.shape == (B, repr_dim)
    assert jnp.allclose(out_f32, ref, atol=1e-4, rtol=1e-4)

    # ---- f32 path through the two-pass fallback ----------------------------
    out_2p = jax.block_until_ready(
        encoder_forward(state, *p32, repr_dim=repr_dim, force_two_pass=True))
    assert jnp.allclose(out_2p, ref, atol=1e-4, rtol=1e-4)

    # ---- ragged batch (B not a multiple of the tile): exercises masking ----
    B2 = 24
    state2 = jax.random.normal(jax.random.PRNGKey(1), (B2, state_dim), jnp.float32)
    ref2 = _reference(state2, *params)
    out_rag = jax.block_until_ready(
        encoder_forward(state2, *p32, repr_dim=repr_dim, block_b=16))
    assert out_rag.shape == (B2, repr_dim)
    assert jnp.allclose(out_rag, ref2, atol=1e-4, rtol=1e-4)

    # ---- bf16 fast path, checked against a bf16-emulated reference ---------
    pbf = prepare_params(*params, matmul_dtype=jnp.bfloat16)
    out_bf = jax.block_until_ready(
        encoder_forward(state, *pbf, repr_dim=repr_dim))
    emu = _reference_emulated(state, *params, mm_dtype=jnp.bfloat16)
    assert out_bf.shape == (B, repr_dim)
    assert jnp.allclose(out_bf, emu, atol=3e-2, rtol=3e-2)
    assert jnp.allclose(out_bf, ref, atol=1e-1, rtol=1e-1)

    print("KERNEL_OK")
</pallas_src>

<mosaic_0001>
module attributes {stable_mosaic.version = 11 : i64} {
  func.func @_fused_kernel(%arg0: i32, %arg1: i32, %arg2: memref<8x32xf32, #tpu.memory_space<vmem>>, %arg3: memref<32x128xf32, #tpu.memory_space<vmem>>, %arg4: memref<1x128xf32, #tpu.memory_space<vmem>>, %arg5: memref<1x128xf32, #tpu.memory_space<vmem>>, %arg6: memref<128x128xf32, #tpu.memory_space<vmem>>, %arg7: memref<1x128xf32, #tpu.memory_space<vmem>>, %arg8: memref<8x128xf32, #tpu.memory_space<vmem>>, %arg9: memref<8x128xf32, #tpu.memory_space<vmem>>, %arg10: memref<1x128xf32, #tpu.memory_space<vmem>>, %arg11: memref<1x128xf32, #tpu.memory_space<vmem>>, %arg12: memref<1x128xf32, #tpu.memory_space<vmem>>, %arg13: memref<1x128xf32, #tpu.memory_space<vmem>>) attributes {dimension_semantics = [#tpu.dimension_semantics<arbitrary>, #tpu.dimension_semantics<arbitrary>], iteration_bounds = array<i64: 2, 1>, scalar_prefetch = 0 : i64, scratch_operands = 5 : i64, tpu.core_type = #tpu.core_type<tc>, window_params = [{transform_indices = @transform_0, window_bounds = array<i64: 8, 32>}, {pipeline_mode = #tpu.pipeline_mode<synchronous>, transform_indices = @transform_1, window_bounds = array<i64: 32, 128>}, {pipeline_mode = #tpu.pipeline_mode<synchronous>, transform_indices = @transform_2, window_bounds = array<i64: 1, 128>}, {pipeline_mode = #tpu.pipeline_mode<synchronous>, transform_indices = @transform_3, window_bounds = array<i64: 1, 128>}, {pipeline_mode = #tpu.pipeline_mode<synchronous>, transform_indices = @transform_4, window_bounds = array<i64: 128, 128>}, {pipeline_mode = #tpu.pipeline_mode<synchronous>, transform_indices = @transform_5, window_bounds = array<i64: 1, 128>}, {transform_indices = @transform_6, window_bounds = array<i64: 8, 128>}]} {
    %c8_i32 = arith.constant 8 : i32
    %0 = arith.muli %arg1, %c8_i32 : i32
    %1 = tpu.assume_multiple %0, 8 : i32
    %c0_i32 = arith.constant 0 : i32
    %2 = arith.cmpi eq, %arg0, %c0_i32 : i32
    %3 = arith.extui %2 : i1 to i32
    %c0_i32_0 = arith.constant 0 : i32
    %4 = arith.cmpi ne, %3, %c0_i32_0 : i32
    scf.if %4 {
      %c0_i32_2 = arith.constant 0 : i32
      %8 = arith.cmpi eq, %arg1, %c0_i32_2 : i32
      %9 = arith.extui %8 : i1 to i32
      %c0_i32_3 = arith.constant 0 : i32
      %10 = arith.cmpi ne, %9, %c0_i32_3 : i32
      scf.if %10 {
        %cst_20 = arith.constant 0.000000e+00 : f32
        %36 = vector.broadcast %cst_20 : f32 to vector<1x128xf32>
        %c0_21 = arith.constant 0 : index
        %c0_22 = arith.constant 0 : index
        %37 = vector.load %arg10[%c0_21, %c0_22] : memref<1x128xf32, #tpu.memory_space<vmem>>, vector<1x128xf32>
        tpu.vector_store %arg10[%c0_21, %c0_22], %36 {strides = array<i32>} : memref<1x128xf32, #tpu.memory_space<vmem>>, vector<1x128xf32>,
        %cst_23 = arith.constant 0.000000e+00 : f32
        %38 = vector.broadcast %cst_23 : f32 to vector<1x128xf32>
        %c0_24 = arith.constant 0 : index
        %c0_25 = arith.constant 0 : index
        %39 = vector.load %arg11[%c0_24, %c0_25] : memref<1x128xf32, #tpu.memory_space<vmem>>, vector<1x128xf32>
        tpu.vector_store %arg11[%c0_24, %c0_25], %38 {strides = array<i32>} : memref<1x128xf32, #tpu.memory_space<vmem>>, vector<1x128xf32>,
      } else {
      }
      %c0 = arith.constant 0 : index
      %c0_4 = arith.constant 0 : index
      %11 = vector.load %arg2[%c0, %c0_4] : memref<8x32xf32, #tpu.memory_space<vmem>>, vector<8x32xf32>
      %c0_5 = arith.constant 0 : index
      %c0_6 = arith.constant 0 : index
      %12 = vector.load %arg3[%c0_5, %c0_6] : memref<32x128xf32, #tpu.memory_space<vmem>>, vector<32x128xf32>
      %cst = arith.constant dense<0.000000e+00> : vector<8x128xf32>
      %13 = tpu.matmul %11, %12, %cst {dimension_numbers = #tpu.dot_dimension_numbers<[1], [0], [0], [1], [0, 0, 1, 1], [], []>} : vector<8x32xf32>, vector<32x128xf32>, vector<8x128xf32> -> vector<8x128xf32>
      %14 = tpu.iota {dimensions = array<i32: 0>} : vector<8x1xi32>
      %15 = vector.broadcast %1 : i32 to vector<8x1xi32>
      %16 = arith.addi %15, %14 : vector<8x1xi32>
      %c8_i32_7 = arith.constant 8 : i32
      %17 = vector.broadcast %c8_i32_7 : i32 to vector<8x1xi32>
      %18 = arith.cmpi slt, %16, %17 : vector<8x1xi32>
      %cst_8 = arith.constant 0.000000e+00 : f32
      %19 = vector.shape_cast %18 : vector<8x1xi1> to vector<8x1xi1>
      %20 = vector.broadcast %19 : vector<8x1xi1> to vector<8x128xi1>
      %21 = vector.broadcast %cst_8 : f32 to vector<8x128xf32>
      %22 = arith.select %20, %13, %21 : vector<8x128xi1>, vector<8x128xf32>
      %23 = arith.index_cast %1 : i32 to index
      %c0_9 = arith.constant 0 : index
      %24 = vector.load %arg9[%23, %c0_9] : memref<8x128xf32, #tpu.memory_space<vmem>>, vector<8x128xf32>
      tpu.vector_store %arg9[%23, %c0_9], %22 {strides = array<i32>} : memref<8x128xf32, #tpu.memory_space<vmem>>, vector<8x128xf32>,
      %c0_10 = arith.constant 0 : index
      %c0_11 = arith.constant 0 : index
      %25 = vector.load %arg10[%c0_10, %c0_11] : memref<1x128xf32, #tpu.memory_space<vmem>>, vector<1x128xf32>
      %cst_12 = arith.constant dense<0.000000e+00> : vector<128xf32>
      %26 = vector.multi_reduction <add>, %22, %cst_12 [0] : vector<8x128xf32> to vector<128xf32>
      %27 = vector.shape_cast %26 : vector<128xf32> to vector<1x128xf32>
      %28 = arith.addf %25, %27 : vector<1x128xf32>
      %c0_13 = arith.constant 0 : index
      %c0_14 = arith.constant 0 : index
      %29 = vector.load %arg10[%c0_13, %c0_14] : memref<1x128xf32, #tpu.memory_space<vmem>>, vector<1x128xf32>
      tpu.vector_store %arg10[%c0_13, %c0_14], %28 {strides = array<i32>} : memref<1x128xf32, #tpu.memory_space<vmem>>, vector<1x128xf32>,
      %c0_15 = arith.constant 0 : index
      %c0_16 = arith.constant 0 : index
      %30 = vector.load %arg11[%c0_15, %c0_16] : memref<1x128xf32, #tpu.memory_space<vmem>>, vector<1x128xf32>
      %31 = arith.mulf %22, %22 : vector<8x128xf32>
      %cst_17 = arith.constant dense<0.000000e+00> : vector<128xf32>
      %32 = vector.multi_reduction <add>, %31, %cst_17 [0] : vector<8x128xf32> to vector<128xf32>
      %33 = vector.shape_cast %32 : vector<128xf32> to vector<1x128xf32>
      %34 = arith.addf %30, %33 : vector<1x128xf32>
      %c0_18 = arith.constant 0 : index
      %c0_19 = arith.constant 0 : index
      %35 = vector.load %arg11[%c0_18, %c0_19] : memref<1x128xf32, #tpu.memory_space<vmem>>, vector<1x128xf32>
      tpu.vector_store %arg11[%c0_18, %c0_19], %34 {strides = array<i32>} : memref<1x128xf32, #tpu.memory_space<vmem>>, vector<1x128xf32>,
    } else {
    }
    %c1_i32 = arith.constant 1 : i32
    %5 = arith.cmpi eq, %arg0, %c1_i32 : i32
    %6 = arith.extui %5 : i1 to i32
    %c0_i32_1 = arith.constant 0 : i32
    %7 = arith.cmpi ne, %6, %c0_i32_1 : i32
    scf.if %7 {
      %c0_i32_2 = arith.constant 0 : i32
      %8 = arith.cmpi eq, %arg1, %c0_i32_2 : i32
      %9 = arith.extui %8 : i1 to i32
      %c0_i32_3 = arith.constant 0 : i32
      %10 = arith.cmpi ne, %9, %c0_i32_3 : i32
      scf.if %10 {
        %c0_15 = arith.constant 0 : index
        %c0_16 = arith.constant 0 : index
        %28 = vector.load %arg10[%c0_15, %c0_16] : memref<1x128xf32, #tpu.memory_space<vmem>>, vector<1x128xf32>
        %c0_17 = arith.constant 0 : index
        %c0_18 = arith.constant 0 : index
        %29 = vector.load %arg11[%c0_17, %c0_18] : memref<1x128xf32, #tpu.memory_space<vmem>>, vector<1x128xf32>
        %c0_19 = arith.constant 0 : index
        %c0_20 = arith.constant 0 : index
        %30 = vector.load %arg4[%c0_19, %c0_20] : memref<1x128xf32, #tpu.memory_space<vmem>>, vector<1x128xf32>
        %c0_21 = arith.constant 0 : index
        %c0_22 = arith.constant 0 : index
        %31 = vector.load %arg5[%c0_21, %c0_22] : memref<1x128xf32, #tpu.memory_space<vmem>>, vector<1x128xf32>
        %cst_23 = arith.constant 1.250000e-01 : f32
        %32 = vector.broadcast %cst_23 : f32 to vector<1x128xf32>
        %33 = arith.mulf %28, %32 : vector<1x128xf32>
        %cst_24 = arith.constant 1.250000e-01 : f32
        %34 = vector.broadcast %cst_24 : f32 to vector<1x128xf32>
        %35 = arith.mulf %29, %34 : vector<1x128xf32>
        %36 = arith.mulf %33, %33 : vector<1x128xf32>
        %37 = arith.subf %35, %36 : vector<1x128xf32>
        %cst_25 = arith.constant 0.000000e+00 : f32
        %38 = vector.broadcast %cst_25 : f32 to vector<1x128xf32>
        %39 = arith.maximumf %37, %38 : vector<1x128xf32>
        %cst_26 = arith.constant 9.99999974E-6 : f32
        %40 = vector.broadcast %cst_26 : f32 to vector<1x128xf32>
        %41 = arith.addf %39, %40 : vector<1x128xf32>
        %42 = math.rsqrt %41 : vector<1x128xf32>
        %43 = arith.mulf %30, %42 : vector<1x128xf32>
        %44 = arith.mulf %33, %43 : vector<1x128xf32>
        %45 = arith.subf %31, %44 : vector<1x128xf32>
        %c0_27 = arith.constant 0 : index
        %c0_28 = arith.constant 0 : index
        %46 = vector.load %arg12[%c0_27, %c0_28] : memref<1x128xf32, #tpu.memory_space<vmem>>, vector<1x128xf32>
        tpu.vector_store %arg12[%c0_27, %c0_28], %43 {strides = array<i32>} : memref<1x128xf32, #tpu.memory_space<vmem>>, vector<1x128xf32>,
        %c0_29 = arith.constant 0 : index
        %c0_30 = arith.constant 0 : index
        %47 = vector.load %arg13[%c0_29, %c0_30] : memref<1x128xf32, #tpu.memory_space<vmem>>, vector<1x128xf32>
        tpu.vector_store %arg13[%c0_29, %c0_30], %45 {strides = array<i32>} : memref<1x128xf32, #tpu.memory_space<vmem>>, vector<1x128xf32>,
      } else {
      }
      %11 = arith.index_cast %1 : i32 to index
      %c0 = arith.constant 0 : index
      %12 = vector.load %arg9[%11, %c0] : memref<8x128xf32, #tpu.memory_space<vmem>>, vector<8x128xf32>
      %c0_4 = arith.constant 0 : index
      %c0_5 = arith.constant 0 : index
      %13 = vector.load %arg12[%c0_4, %c0_5] : memref<1x128xf32, #tpu.memory_space<vmem>>, vector<1x128xf32>
      %c0_6 = arith.constant 0 : index
      %c0_7 = arith.constant 0 : index
      %14 = vector.load %arg13[%c0_6, %c0_7] : memref<1x128xf32, #tpu.memory_space<vmem>>, vector<1x128xf32>
      %15 = vector.broadcast %13 : vector<1x128xf32> to vector<8x128xf32>
      %16 = arith.mulf %12, %15 : vector<8x128xf32>
      %17 = vector.broadcast %14 : vector<1x128xf32> to vector<8x128xf32>
      %18 = arith.addf %16, %17 : vector<8x128xf32>
      %cst = arith.constant 0.00999999977 : f32
      %19 = vector.broadcast %cst : f32 to vector<8x128xf32>
      %20 = arith.mulf %19, %18 : vector<8x128xf32>
      %21 = arith.maximumf %18, %20 : vector<8x128xf32>
      %c0_8 = arith.constant 0 : index
      %c0_9 = arith.constant 0 : index
      %22 = vector.load %arg6[%c0_8, %c0_9] : memref<128x128xf32, #tpu.memory_space<vmem>>, vector<128x128xf32>
      %cst_10 = arith.constant dense<0.000000e+00> : vector<8x128xf32>
      %23 = tpu.matmul %21, %22, %cst_10 {dimension_numbers = #tpu.dot_dimension_numbers<[1], [0], [0], [1], [0, 0, 1, 1], [], []>} : vector<8x128xf32>, vector<128x128xf32>, vector<8x128xf32> -> vector<8x128xf32>
      %c0_11 = arith.constant 0 : index
      %c0_12 = arith.constant 0 : index
      %24 = vector.load %arg7[%c0_11, %c0_12] : memref<1x128xf32, #tpu.memory_space<vmem>>, vector<1x128xf32>
      %25 = vector.broadcast %24 : vector<1x128xf32> to vector<8x128xf32>
      %26 = arith.addf %23, %25 : vector<8x128xf32>
      %c0_13 = arith.constant 0 : index
      %c0_14 = arith.constant 0 : index
      %27 = vector.load %arg8[%c0_13, %c0_14] : memref<8x128xf32, #tpu.memory_space<vmem>>, vector<8x128xf32>
      tpu.vector_store %arg8[%c0_13, %c0_14], %26 {strides = array<i32>} : memref<8x128xf32, #tpu.memory_space<vmem>>, vector<8x128xf32>,
    } else {
    }
    return
  }
  func.func @transform_0(%arg0: i32, %arg1: i32) -> (i32, i32) {
    %c1_i32 = arith.constant 1 : i32
    %0 = arith.subi %c1_i32, %arg0 : i32
    %1 = arith.muli %arg1, %0 : i32
    %c0_i32 = arith.constant 0 : i32
    %c0_i32_0 = arith.constant 0 : i32
    return %1, %c0_i32 : i32, i32
  }
  func.func @transform_1(%arg0: i32, %arg1: i32) -> (i32, i32) {
    %c0_i32 = arith.constant 0 : i32
    %c0_i32_0 = arith.constant 0 : i32
    %c0_i32_1 = arith.constant 0 : i32
    return %c0_i32, %c0_i32_0 : i32, i32
  }
  func.func @transform_2(%arg0: i32, %arg1: i32) -> (i32, i32) {
    %c0_i32 = arith.constant 0 : i32
    %c0_i32_0 = arith.constant 0 : i32
    %c0_i32_1 = arith.constant 0 : i32
    return %c0_i32, %c0_i32_0 : i32, i32
  }
  func.func @transform_3(%arg0: i32, %arg1: i32) -> (i32, i32) {
    %c0_i32 = arith.constant 0 : i32
    %c0_i32_0 = arith.constant 0 : i32
    %c0_i32_1 = arith.constant 0 : i32
    return %c0_i32, %c0_i32_0 : i32, i32
  }
  func.func @transform_4(%arg0: i32, %arg1: i32) -> (i32, i32) {
    %c0_i32 = arith.constant 0 : i32
    %c0_i32_0 = arith.constant 0 : i32
    %c0_i32_1 = arith.constant 0 : i32
    return %c0_i32, %c0_i32_0 : i32, i32
  }
  func.func @transform_5(%arg0: i32, %arg1: i32) -> (i32, i32) {
    %c0_i32 = arith.constant 0 : i32
    %c0_i32_0 = arith.constant 0 : i32
    %c0_i32_1 = arith.constant 0 : i32
    return %c0_i32, %c0_i32_0 : i32, i32
  }
  func.func @transform_6(%arg0: i32, %arg1: i32) -> (i32, i32) {
    %0 = arith.muli %arg1, %arg0 : i32
    %c0_i32 = arith.constant 0 : i32
    %c0_i32_0 = arith.constant 0 : i32
    return %0, %c0_i32 : i32, i32
  }
}

</mosaic_0001>

<llo_original>
// kernel: encoder_forward.1
$region0: #{encoder_forward.1}
  #allocation0 [shape = 'u32[]', space=smem, size = 0x4, offset = 0x4, fixed_abs, tag = 'smem constant byte address 0x4 - core index']
  #allocation1 [shape = 'u32[144,128]{1,0:T(1,128)}', space=vmem, size = 0x12000, scoped, tag = 'internal scratch']
  #allocation2 [shape = 'f32[8,128]{1,0:T(8,128)}', space=vmem, size = 0x1000, scoped, tag = 'scratch operand']
  #allocation3 [shape = 'f32[1,128]{1,0:T(1,128)}', space=vmem, size = 0x200, scoped, tag = 'scratch operand']
  #allocation4 [shape = 'f32[1,128]{1,0:T(1,128)}', space=vmem, size = 0x200, scoped, tag = 'scratch operand']
  #allocation5 [shape = 'f32[1,128]{1,0:T(1,128)}', space=vmem, size = 0x200, scoped, tag = 'scratch operand']
  #allocation6 [shape = 'f32[1,128]{1,0:T(1,128)}', space=vmem, size = 0x200, scoped, tag = 'scratch operand']
  %s0 = inlined_call_operand.hbm [shape: f32[8,32], index: 0, kind: input, shape index: {}]
  %s1 = inlined_call_operand.hbm [shape: f32[32,128], index: 1, kind: input, shape index: {}]
  %s2 = inlined_call_operand.vmem [shape: f32[1,128], index: 2, kind: input, shape index: {}]
  %s3 = inlined_call_operand.vmem [shape: f32[1,128], index: 3, kind: input, shape index: {}]
  %s4 = inlined_call_operand.hbm [shape: f32[128,128], index: 4, kind: input, shape index: {}]
  %s5 = inlined_call_operand.vmem [shape: f32[1,128], index: 5, kind: input, shape index: {}]
  %s6 = inlined_call_operand.hbm [shape: f32[8,128], index: 6, kind: output, shape index: {}]
  %s7 = sld [smem:[#allocation0]]
  $region85: #{encoder_forward.1} parent=0
    _
  %s9 = ssub.s32 1, %s7
  %s10 = scalar_select 0, %s9, %s7
  $region1: #{encoder_forward.1} parent=0
    #allocation7 [shape = 'u8[8192]{0}', space=vmem, size = 0x2000, scoped, tag = 'input window, operand 0']
    #allocation8 [shape = 's32[2]{0}', space=sflag, size = 0x8, scoped, tag = 'scoped memory for encoder_forward.1']
    #allocation9 [shape = 's32[2]{0}', space=sflag, size = 0x8, scoped, tag = 'scoped memory for encoder_forward.1']
    #allocation10 [shape = 'u8[16384]{0}', space=vmem, size = 0x4000, scoped, tag = 'input window, operand 1, single buffered']
    #allocation11 [shape = 's32[1]{0}', space=sflag, size = 0x4, scoped, tag = 'scoped memory for encoder_forward.1']
    #allocation12 [shape = 'u8[65536]{0}', space=vmem, size = 0x10000, scoped, tag = 'input window, operand 4, single buffered']
    #allocation13 [shape = 'u8[8192]{0}', space=vmem, size = 0x2000, scoped, tag = 'output window, operand 0']
    %11 = vsyncpa [#allocation8], 0
    %s12 = scalar_lea.sflag [#allocation8], 1
    %13 = vsyncpa %s12, 0
    %14 = vsyncpa [#allocation11], 0
    %15 = vsyncpa [#allocation9], 0
    %s16 = scalar_lea.sflag [#allocation9], 1
    %17 = vsyncpa %s16, 0
    loop: start=0, step=1, limit=4
    $region2: #{encoder_forward.1} parent=1 // loop_pre_header
      _
    $region3: #{encoder_forward.1} parent=1 // loop_header
      %s19 = sphi 0, %s23
      %p20 = scmp.ge.s32.totalorder %s19, 4
      %s26 = sphi 0, %s38
      %s27 = sphi 0, %s34
      %s28 = sphi 0, %s26
      %s29 = sphi 0, %s27
      %s30 = sphi 0, %s28
      %s31 = sphi 0, %s29
      %s45 = sphi 0, %s47
      %s48 = sphi 0, %s45
      %s49 = sphi 0, %s48
      %s65 = sphi 0, %s49
      %s69 = sphi 0, %s69
      %s71 = sphi 0, %s69
      %s72 = sphi 0, %s71
      %s86 = sphi 0, %s72
      %s90 = sphi 0, %s90
      %s92 = sphi 0, %s90
      %s93 = sphi 0, %s92
      %s107 = sphi 0, %s93
      %s111 = sphi 0, %s111
      %s113 = sphi 0, %s111
      %s114 = sphi 0, %s113
      %s128 = sphi 0, %s114
      %s132 = sphi 0, %s132
      %s134 = sphi 0, %s132
      %s135 = sphi 0, %s134
      %s149 = sphi 0, %s135
      %s153 = sphi 0, %s153
      %s155 = sphi 0, %s153
      %s156 = sphi 0, %s155
      %s170 = sphi 0, %s156
      %s178 = sphi 0, %s180
      %s181 = sphi 0, %s178
      %s182 = sphi 0, %s181
      %s198 = sphi 0, %s182
    $region4: #{encoder_forward.1} parent=1 // loop_header_branch
      %22 = sbr.rel (%p20) target = $region8
    $region5: #{encoder_forward.1} parent=1 // loop_body
      %s24 = ssub.s32 %s19, 1
      %s25 = ssub.s32 %s19, 2
      %s32 = sadd.s32 1, %s27
      %p33 = scmp.ge.s32.totalorder %s32, 1
      %s34 = scalar_select %p33, 0, %s32
      %s35 = sadd.s32 1, %s26
      %s36 = scalar_select %p33, %s35, %s26
      %p37 = scmp.ge.s32.totalorder %s36, 2
      %s38 = scalar_select %p37, 0, %s36
      %s39 = ssub.s32 1, %s26
      %s40 = smul.u32 %s27, %s39
      %s41 = ssub.s32 1, %s38
      %s42 = smul.u32 %s34, %s41
      %s43 = ssub.s32 %s40, %s42
      %p44 = scmp.eq.s32.totalorder %s43, 0
      %s46 = sadd.s32 %s45, 1
      %s47 = scalar_select %p44, %s45, %s46
      %p50 = pneg %p44
      %p51 = scmp.eq.s32.totalorder %s19, 1
      %p52 = por %p50, %p51
      %p53 = scmp.ne.s32.totalorder %s45, %s48
      %p54 = scmp.eq.s32.totalorder %s19, 0
      %p55 = por %p53, %p54
      %p56 = scmp.ne.s32.totalorder %s45, %s48
      %p57 = scmp.eq.s32.totalorder %s24, 1
      %p58 = por %p56, %p57
      %p59 = scmp.ne.s32.totalorder %s48, %s49
      %p60 = scmp.eq.s32.totalorder %s24, 0
      %p61 = por %p59, %p60
      %p62 = scmp.ne.s32.totalorder %s48, %s49
      %p63 = scmp.eq.s32.totalorder %s25, 1
      %p64 = por %p62, %p63
      %p66 = scmp.ne.s32.totalorder %s49, %s65
      %p67 = scmp.eq.s32.totalorder %s25, 0
      %p68 = por %p66, %p67
      %s70 = sadd.s32 %s69, 1
      %p73 = scmp.eq.s32.totalorder %s19, 1
      %p74 = scmp.ne.s32.totalorder %s69, %s71
      %p75 = scmp.eq.s32.totalorder %s19, 0
      %p76 = por %p74, %p75
      %p77 = scmp.ne.s32.totalorder %s69, %s71
      %p78 = scmp.eq.s32.totalorder %s24, 1
      %p79 = por %p77, %p78
      %p80 = scmp.ne.s32.totalorder %s71, %s72
      %p81 = scmp.eq.s32.totalorder %s24, 0
      %p82 = por %p80, %p81
      %p83 = scmp.ne.s32.totalorder %s71, %s72
      %p84 = scmp.eq.s32.totalorder %s25, 1
      %p85 = por %p83, %p84
      %p87 = scmp.ne.s32.totalorder %s72, %s86
      %p88 = scmp.eq.s32.totalorder %s25, 0
      %p89 = por %p87, %p88
      %s91 = sadd.s32 %s90, 1
      %p94 = scmp.eq.s32.totalorder %s19, 1
      %p95 = scmp.ne.s32.totalorder %s90, %s92
      %p96 = scmp.eq.s32.totalorder %s19, 0
      %p97 = por %p95, %p96
      %p98 = scmp.ne.s32.totalorder %s90, %s92
      %p99 = scmp.eq.s32.totalorder %s24, 1
      %p100 = por %p98, %p99
      %p101 = scmp.ne.s32.totalorder %s92, %s93
      %p102 = scmp.eq.s32.totalorder %s24, 0
      %p103 = por %p101, %p102
      %p104 = scmp.ne.s32.totalorder %s92, %s93
      %p105 = scmp.eq.s32.totalorder %s25, 1
      %p106 = por %p104, %p105
      %p108 = scmp.ne.s32.totalorder %s93, %s107
      %p109 = scmp.eq.s32.totalorder %s25, 0
      %p110 = por %p108, %p109
      %s112 = sadd.s32 %s111, 1
      %p115 = scmp.eq.s32.totalorder %s19, 1
      %p116 = scmp.ne.s32.totalorder %s111, %s113
      %p117 = scmp.eq.s32.totalorder %s19, 0
      %p118 = por %p116, %p117
      %p119 = scmp.ne.s32.totalorder %s111, %s113
      %p120 = scmp.eq.s32.totalorder %s24, 1
      %p121 = por %p119, %p120
      %p122 = scmp.ne.s32.totalorder %s113, %s114
      %p123 = scmp.eq.s32.totalorder %s24, 0
      %p124 = por %p122, %p123
      %p125 = scmp.ne.s32.totalorder %s113, %s114
      %p126 = scmp.eq.s32.totalorder %s25, 1
      %p127 = por %p125, %p126
      %p129 = scmp.ne.s32.totalorder %s114, %s128
      %p130 = scmp.eq.s32.totalorder %s25, 0
      %p131 = por %p129, %p130
      %s133 = sadd.s32 %s132, 1
      %p136 = scmp.eq.s32.totalorder %s19, 1
      %p137 = scmp.ne.s32.totalorder %s132, %s134
      %p138 = scmp.eq.s32.totalorder %s19, 0
      %p139 = por %p137, %p138
      %p140 = scmp.ne.s32.totalorder %s132, %s134
      %p141 = scmp.eq.s32.totalorder %s24, 1
      %p142 = por %p140, %p141
      %p143 = scmp.ne.s32.totalorder %s134, %s135
      %p144 = scmp.eq.s32.totalorder %s24, 0
      %p145 = por %p143, %p144
      %p146 = scmp.ne.s32.totalorder %s134, %s135
      %p147 = scmp.eq.s32.totalorder %s25, 1
      %p148 = por %p146, %p147
      %p150 = scmp.ne.s32.totalorder %s135, %s149
      %p151 = scmp.eq.s32.totalorder %s25, 0
      %p152 = por %p150, %p151
      %s154 = sadd.s32 %s153, 1
      %p157 = scmp.eq.s32.totalorder %s19, 1
      %p158 = scmp.ne.s32.totalorder %s153, %s155
      %p159 = scmp.eq.s32.totalorder %s19, 0
      %p160 = por %p158, %p159
      %p161 = scmp.ne.s32.totalorder %s153, %s155
      %p162 = scmp.eq.s32.totalorder %s24, 1
      %p163 = por %p161, %p162
      %p164 = scmp.ne.s32.totalorder %s155, %s156
      %p165 = scmp.eq.s32.totalorder %s24, 0
      %p166 = por %p164, %p165
      %p167 = scmp.ne.s32.totalorder %s155, %s156
      %p168 = scmp.eq.s32.totalorder %s25, 1
      %p169 = por %p167, %p168
      %p171 = scmp.ne.s32.totalorder %s156, %s170
      %p172 = scmp.eq.s32.totalorder %s25, 0
      %p173 = por %p171, %p172
      %s174 = smul.u32 %s27, %s26
      %s175 = smul.u32 %s34, %s38
      %s176 = ssub.s32 %s174, %s175
      %p177 = scmp.eq.s32.totalorder %s176, 0
      %s179 = sadd.s32 %s178, 1
      %s180 = scalar_select %p177, %s178, %s179
      %p183 = pneg %p177
      %p184 = scmp.eq.s32.totalorder %s19, 1
      %p185 = por %p183, %p184
      %p186 = scmp.ne.s32.totalorder %s178, %s181
      %p187 = scmp.eq.s32.totalorder %s19, 0
      %p188 = por %p186, %p187
      %p189 = scmp.ne.s32.totalorder %s178, %s181
      %p190 = scmp.eq.s32.totalorder %s24, 1
      %p191 = por %p189, %p190
      %p192 = scmp.ne.s32.totalorder %s181, %s182
      %p193 = scmp.eq.s32.totalorder %s24, 0
      %p194 = por %p192, %p193
      %p195 = scmp.ne.s32.totalorder %s181, %s182
      %p196 = scmp.eq.s32.totalorder %s25, 1
      %p197 = por %p195, %p196
      %p199 = scmp.ne.s32.totalorder %s182, %s198
      %p200 = scmp.eq.s32.totalorder %s25, 0
      %p201 = por %p199, %p200
      %p202 = scmp.le.s32.totalorder 1, %s19
      %p203 = scmp.lt.s32.totalorder %s19, 3
      %p204 = pnand %p202, %p203
      %p205 = pneg %p204
      // Predicated region
      $region9: #{encoder_forward.1} parent=5 // pred_check
        _
      $region10: #{encoder_forward.1} parent=5 // pred_check_branch
        %207 = sbr.rel (%p204) target = $region12
      $region11: #{encoder_forward.1} parent=5 // pred_region
        %s208 = ssub.s32 %s19, 1
        // Predicated region
        $region13: #{encoder_forward.1} parent=11 // pred_check
          %p209 = pneg %p82
        $region14: #{encoder_forward.1} parent=11 // pred_check_branch
          %211 = sbr.rel (%p209) target = $region16
        $region15: #{encoder_forward.1} parent=11 // pred_region
          %s213 = ssub.s32 512, 512
          %214 = vsyncadd [#allocation11], %s213
          %s215 = sshll.u32 [#allocation10], 4
          %s216 = int_to_ptr.vmem [resolvable:$true] %s215
          %221 = dma.hbm_to_vmem [thread:$0]  %s1, 512, %s216, [#allocation11], 128, 128, 8
        $region16: #{encoder_forward.1} parent=11 // pred_fallthru
          _
        // Predicated region
        $region17: #{encoder_forward.1} parent=11 // pred_check
          %p222 = pneg %p103
        $region18: #{encoder_forward.1} parent=11 // pred_check_branch
          %224 = sbr.rel (%p222) target = $region20
        $region19: #{encoder_forward.1} parent=11 // pred_region
          _
        $region20: #{encoder_forward.1} parent=11 // pred_fallthru
          _
        // Predicated region
        $region21: #{encoder_forward.1} parent=11 // pred_check
          %p225 = pneg %p124
        $region22: #{encoder_forward.1} parent=11 // pred_check_branch
          %227 = sbr.rel (%p225) target = $region24
        $region23: #{encoder_forward.1} parent=11 // pred_region
          _
        $region24: #{encoder_forward.1} parent=11 // pred_fallthru
          _
        // Predicated region
        $region25: #{encoder_forward.1} parent=11 // pred_check
          %p228 = pneg %p145
        $region26: #{encoder_forward.1} parent=11 // pred_check_branch
          %230 = sbr.rel (%p228) target = $region28
        $region27: #{encoder_forward.1} parent=11 // pred_region
          %s232 = ssub.s32 2048, 2048
          %233 = vsyncadd [#allocation11], %s232
          %s234 = sshll.u32 [#allocation12], 4
          %s235 = int_to_ptr.vmem [resolvable:$true] %s234
          %240 = dma.hbm_to_vmem [thread:$0]  %s4, 2048, %s235, [#allocation11], 128, 128, 8
        $region28: #{encoder_forward.1} parent=11 // pred_fallthru
          _
        // Predicated region
        $region29: #{encoder_forward.1} parent=11 // pred_check
          %p241 = pneg %p166
        $region30: #{encoder_forward.1} parent=11 // pred_check_branch
          %243 = sbr.rel (%p241) target = $region32
        $region31: #{encoder_forward.1} parent=11 // pred_region
          _
        $region32: #{encoder_forward.1} parent=11 // pred_fallthru
          _
      $region12: #{encoder_forward.1} parent=5 // pred_fallthru
        _
      %p244 = scmp.lt.s32.totalorder %s19, 2
      // Predicated region
      $region33: #{encoder_forward.1} parent=5 // pred_check
        %p245 = pneg %p244
      $region34: #{encoder_forward.1} parent=5 // pred_check_branch
        %247 = sbr.rel (%p245) target = $region36
      $region35: #{encoder_forward.1} parent=5 // pred_region
        // Predicated region
        $region37: #{encoder_forward.1} parent=35 // pred_check
          %p248 = pneg %p55
        $region38: #{encoder_forward.1} parent=35 // pred_check_branch
          %250 = sbr.rel (%p248) target = $region40
        $region39: #{encoder_forward.1} parent=35 // pred_region
          %s251 = sand.u32 %s45, 1
          %s252 = scalar_lea.sflag [#allocation8], %s251
          %s253 = sand.u32 %s45, 1
          %s254 = smul.addr %s253, 8
          %s255 = scalar_lea.vmem [#allocation7], %s254
          %s256 = ssub.s32 1, %s26
          %s257 = smul.u32 %s27, %s256
          %s259 = ssub.s32 128, 128
          %260 = vsyncadd %s252, %s259
          %s261 = smul.addr %s257, 128
          %s262 = scalar_lea.hbm %s0, %s261
          %s264 = sshll.u32 %s255, 4
          %s265 = int_to_ptr.vmem [resolvable:$true] %s264
          %267 = dma.hbm_to_vmem [thread:$0]  %s262, 128, %s265, %s252
        $region40: #{encoder_forward.1} parent=35 // pred_fallthru
          _
      $region36: #{encoder_forward.1} parent=5 // pred_fallthru
        _
      %p268 = scmp.le.s32.totalorder 1, %s19
      %p269 = scmp.lt.s32.totalorder %s19, 3
      %p270 = pnand %p268, %p269
      %p271 = pneg %p270
      // Predicated region
      $region41: #{encoder_forward.1} parent=5 // pred_check
        _
      $region42: #{encoder_forward.1} parent=5 // pred_check_branch
        %273 = sbr.rel (%p270) target = $region44
      $region43: #{encoder_forward.1} parent=5 // pred_region
        %s274 = ssub.s32 %s19, 1
        %s275 = sand.u32 %s48, 1
        %s276 = scalar_lea.sflag [#allocation8], %s275
        %s277 = sand.u32 %s48, 1
        %s278 = smul.addr %s277, 8
        %s279 = scalar_lea.vmem [#allocation7], %s278
        // Predicated region
        $region45: #{encoder_forward.1} parent=43 // pred_check
          %p280 = pneg %p61
        $region46: #{encoder_forward.1} parent=43 // pred_check_branch
          %282 = sbr.rel (%p280) target = $region48
        $region47: #{encoder_forward.1} parent=43 // pred_region
          %283 = dma.done %s276, 128
        $region48: #{encoder_forward.1} parent=43 // pred_fallthru
          _
        // Predicated region
        $region49: #{encoder_forward.1} parent=43 // pred_check
          %p284 = pneg %p82
        $region50: #{encoder_forward.1} parent=43 // pred_check_branch
          %286 = sbr.rel (%p284) target = $region52
        $region51: #{encoder_forward.1} parent=43 // pred_region
          %287 = dma.done [#allocation11], 512
        $region52: #{encoder_forward.1} parent=43 // pred_fallthru
          _
        // Predicated region
        $region53: #{encoder_forward.1} parent=43 // pred_check
          %p288 = pneg %p145
        $region54: #{encoder_forward.1} parent=43 // pred_check_branch
          %290 = sbr.rel (%p288) target = $region56
        $region55: #{encoder_forward.1} parent=43 // pred_region
          %291 = dma.done [#allocation11], 2048
        $region56: #{encoder_forward.1} parent=43 // pred_fallthru
          _
        %s292 = sand.u32 %s48, 1
        %s293 = scalar_lea.sflag [#allocation8], %s292
        %s294 = sand.u32 %s48, 1
        %s295 = smul.addr %s294, 8
        %s296 = scalar_lea.vmem [#allocation7], %s295
        %p297 = pneg %p61
        %p298 = pneg %p58
        %p299 = pneg %p82
        %p300 = pneg %p79
        %p301 = pneg %p103
        %p302 = pneg %p100
        %p303 = pneg %p124
        %p304 = pneg %p121
        %p305 = pneg %p145
        %p306 = pneg %p142
        %p307 = pneg %p166
        %p308 = pneg %p163
        %p309 = pneg %p194
        %p310 = pneg %p191
        %s311 = sand.u32 %s181, 1
        %s312 = scalar_lea.sflag [#allocation9], %s311
        %s313 = sand.u32 %s181, 1
        %s314 = smul.addr %s313, 8
        %s315 = scalar_lea.vmem [#allocation13], %s314
        %s316 = ssub.s32 1, %s28
        %s317 = smul.u32 %s29, %s316
        %s318 = smul.u32 %s29, %s28
        %s319 = smul.u32 %s29, 8
        %p320 = scmp.eq.s32.totalorder %s28, 0
        // Predicated region
        $region57: #{encoder_forward.1} parent=43 // pred_check
          %p321 = pneg %p320
        $region58: #{encoder_forward.1} parent=43 // pred_check_branch
          %323 = sbr.rel (%p321) target = $region60
        $region59: #{encoder_forward.1} parent=43 // pred_region
          %p324 = scmp.eq.s32.totalorder %s29, 0
          // Predicated region
          $region61: #{encoder_forward.1} parent=59 // pred_check
            %p325 = pneg %p324
          $region62: #{encoder_forward.1} parent=59 // pred_check_branch
            %327 = sbr.rel (%p325) target = $region64
          $region63: #{encoder_forward.1} parent=59 // pred_region
            %328 = vst [vmem:[#allocation3] sm:$0x1] 0.0
            %329 = vst [vmem:[#allocation4] sm:$0x1] 0.0
          $region64: #{encoder_forward.1} parent=59 // pred_fallthru
            _
          %v330 = vld [vmem:[%s279] sm:$0xff]
          %v331 = vld [vmem:[#allocation10] sm:$0xff]
          %v332 = vld [vmem:[#allocation10 + $0x8] sm:$0xff]
          %v333 = vld [vmem:[#allocation10 + $0x10] sm:$0xff]
          %v334 = vld [vmem:[#allocation10 + $0x18] sm:$0xff]
          %vm335 = vcmask 261120
          %v337 = vsel %vm335, %v330, 0
          %339 = vmatprep.subr.mxu0 0.0
          %340 = vmatpush1.msra.mxu0 %v331
          %341 = vmatprep.subr.mxu0 0.0
          %342 = vmatpush1.msra.mxu0 %v332
          %343 = vmatprep.subr.mxu0 0.0
          %344 = vmatpush1.msra.mxu0 %v333
          %345 = vmatprep.subr.mxu0 0.0
          %346 = vmatpush1.msra.mxu0 %v334
          %347 = vmatprep.subr.mxu0 0.0
          %348 = vmatpush1.msra.mxu0 0.0
          %349 = vmatprep.subr.mxu0 0.0
          %350 = vmatpush1.msra.mxu0 0.0
          %351 = vmatprep.subr.mxu0 0.0
          %352 = vmatpush1.msra.mxu0 0.0
          %353 = vmatprep.subr.mxu0 0.0
          %354 = vmatpush1.msra.mxu0 0.0
          %355 = vmatprep.subr.mxu0 0.0
          %356 = vmatpush1.msra.mxu0 0.0
          %357 = vmatprep.subr.mxu0 0.0
          %358 = vmatpush1.msra.mxu0 0.0
          %359 = vmatprep.subr.mxu0 0.0
          %360 = vmatpush1.msra.mxu0 0.0
          %361 = vmatprep.subr.mxu0 0.0
          %362 = vmatpush1.msra.mxu0 0.0
          %363 = vmatprep.subr.mxu0 0.0
          %364 = vmatpush1.msra.mxu0 0.0
          %365 = vmatprep.subr.mxu0 0.0
          %366 = vmatpush1.msra.mxu0 0.0
          %367 = vmatprep.subr.mxu0 0.0
          %368 = vmatpush1.msra.mxu0 0.0
          %369 = vmatprep.subr.mxu0 0.0
          %370 = vmatpush1.msra.mxu0 0.0
          %371 = vmatprep.subr.mxu0 0.0
          %372 = vmatpush1.msra.mxu0 0.0
          %373 = vmatprep.subr.mxu0 0.0
          %374 = vmatpush1.msra.mxu0 0.0
          %375 = vmatprep.subr.mxu0 0.0
          %376 = vmatpush1.msra.mxu0 0.0
          %377 = vmatprep.subr.mxu0 0.0
          %378 = vmatpush1.msra.mxu0 0.0
          %379 = vmatprep.subr.mxu0 0.0
          %380 = vmatpush1.msra.mxu0 0.0
          %381 = vmatprep.subr.mxu0 0.0
          %382 = vmatpush1.msra.mxu0 0.0
          %383 = vmatprep.subr.mxu0 0.0
          %384 = vmatpush1.msra.mxu0 0.0
          %385 = vmatprep.subr.mxu0 0.0
          %386 = vmatpush1.msra.mxu0 0.0
          %387 = vmatprep.subr.mxu0 0.0
          %388 = vmatpush1.msra.mxu0 0.0
          %389 = vmatprep.subr.mxu0 0.0
          %390 = vmatpush1.msra.mxu0 0.0
          %391 = vmatprep.subr.mxu0 0.0
          %392 = vmatpush1.msra.mxu0 0.0
          %393 = vmatprep.subr.mxu0 0.0
          %394 = vmatpush1.msra.mxu0 0.0
          %395 = vmatprep.subr.mxu0 0.0
          %396 = vmatpush1.msra.mxu0 0.0
          %397 = vmatprep.subr.mxu0 0.0
          %398 = vmatpush1.msra.mxu0 0.0
          %399 = vmatprep.subr.mxu0 0.0
          %400 = vmatpush1.msra.mxu0 0.0
          %401 = vmatprep.subr.mxu0 0.0
          %402 = vmatpush1.msra.mxu0 0.0
          %403 = vmatprep.mubr.f32.mxu0 0.0
          %404 = vmatmul.mubr.f32.gmra.mrb[0].mxu0 %v337
          %v405 = vpop.f32.mrb[0].mxu0
          %v406 = vadd.f32 0.0, %v405
          %v407 = vpop.f32.mrb[0].mxu0
          %408 = vdwg.mxu0
          %v409 = vlaneseq
          %v410 = vshrl.u32 %v409, 7
          %v411 = vstv %s319
          %v412 = vadd.s32 %v411, %v410
          %vm413 = vcmp.lt.s32.totalorder %v412, 8
          %v414 = vsel %vm413, 1, 0
          %vm415 = vcmp.eq.s32.totalorder %v414, 1
          %v416 = vsel %vm415, %v406, 0.0
          %s417 = scalar_lea.vmem [#allocation2], %s319
          %418 = vst [vmem:[%s417] sm:$0xff] %v416
          %v419 = vld [vmem:[#allocation3] sm:$0x1]
          %v420 = vrot.slane %v416, 4
          %v421 = vadd.f32 %v416, %v420
          %v422 = vrot.slane %v421, 2
          %v423 = vadd.f32 %v421, %v422
          %v424 = vrot.slane %v423, 1
          %v425 = vadd.f32 %v423, %v424
          %v426 = vadd.f32 %v419, %v425
          %427 = vst [vmem:[#allocation3] sm:$0x1] %v426
          %v428 = vld [vmem:[#allocation4] sm:$0x1]
          %v429 = vmul.f32 %v416, %v416
          %v430 = vrot.slane %v429, 4
          %v431 = vadd.f32 %v429, %v430
          %v432 = vrot.slane %v431, 2
          %v433 = vadd.f32 %v431, %v432
          %v434 = vrot.slane %v433, 1
          %v435 = vadd.f32 %v433, %v434
          %v436 = vadd.f32 %v428, %v435
          %437 = vst [vmem:[#allocation4] sm:$0x1] %v436
        $region60: #{encoder_forward.1} parent=43 // pred_fallthru
          _
        %p438 = scmp.eq.s32.totalorder %s28, 1
        // Predicated region
        $region65: #{encoder_forward.1} parent=43 // pred_check
          %p439 = pneg %p438
        $region66: #{encoder_forward.1} parent=43 // pred_check_branch
          %441 = sbr.rel (%p439) target = $region68
        $region67: #{encoder_forward.1} parent=43 // pred_region
          %p442 = scmp.eq.s32.totalorder %s29, 0
          // Predicated region
          $region69: #{encoder_forward.1} parent=67 // pred_check
            %p443 = pneg %p442
          $region70: #{encoder_forward.1} parent=67 // pred_check_branch
            %445 = sbr.rel (%p443) target = $region72
          $region71: #{encoder_forward.1} parent=67 // pred_region
            %v446 = vld [vmem:[#allocation3] sm:$0x1]
            %v447 = vld [vmem:[#allocation4] sm:$0x1]
            %v448 = vld [vmem:[%s2] sm:$0x1]
            %v449 = vld [vmem:[%s3] sm:$0x1]
            %v450 = vmul.f32 %v446, 0.125
            %v451 = vmul.f32 %v447, 0.125
            %v452 = vmul.f32 %v450, %v450
            %v453 = vsub.f32 %v451, %v452
            %v454 = vmax.f32 %v453, 0.0
            %v455 = vadd.f32 %v454, 1e-05
            %v456 = vrsqrt.pop %v455
            %v457 = vmul.f32 %v448, %v456
            %v458 = vmul.f32 %v450, %v457
            %v459 = vsub.f32 %v449, %v458
            %460 = vst [vmem:[#allocation5] sm:$0x1] %v457
            %461 = vst [vmem:[#allocation6] sm:$0x1] %v459
          $region72: #{encoder_forward.1} parent=67 // pred_fallthru
            _
          %s462 = scalar_lea.vmem [#allocation2], %s319
          %v463 = vld [vmem:[%s462] sm:$0xff]
          %v464 = vld [vmem:[#allocation5] sm:$0x1]
          %v465 = vld [vmem:[#allocation6] sm:$0x1]
          %v467 = vlaneseq
          %v468 = vshrl.u32 %v467, 7
          %v469 = vsub.s32 0, %v468
          %v470 = vrot.slane %v464, %v469
          %v472 = vmul.f32 %v463, %v470
          %v474 = vlaneseq
          %v475 = vshrl.u32 %v474, 7
          %v476 = vsub.s32 0, %v475
          %v477 = vrot.slane %v465, %v476
          %v479 = vadd.f32 %v472, %v477
          %v480 = vmul.f32 %v479, 0.01
          %v481 = vmax.f32 %v479, %v480
          %v482 = vld [vmem:[#allocation12] sm:$0xff]
          %v483 = vld [vmem:[#allocation12 + $0x8] sm:$0xff]
          %v484 = vld [vmem:[#allocation12 + $0x10] sm:$0xff]
          %v485 = vld [vmem:[#allocation12 + $0x18] sm:$0xff]
          %v486 = vld [vmem:[#allocation12 + $0x20] sm:$0xff]
          %v487 = vld [vmem:[#allocation12 + $0x28] sm:$0xff]
          %v488 = vld [vmem:[#allocation12 + $0x30] sm:$0xff]
          %v489 = vld [vmem:[#allocation12 + $0x38] sm:$0xff]
          %v490 = vld [vmem:[#allocation12 + $0x40] sm:$0xff]
          %v491 = vld [vmem:[#allocation12 + $0x48] sm:$0xff]
          %v492 = vld [vmem:[#allocation12 + $0x50] sm:$0xff]
          %v493 = vld [vmem:[#allocation12 + $0x58] sm:$0xff]
          %v494 = vld [vmem:[#allocation12 + $0x60] sm:$0xff]
          %v495 = vld [vmem:[#allocation12 + $0x68] sm:$0xff]
          %v496 = vld [vmem:[#allocation12 + $0x70] sm:$0xff]
          %v497 = vld [vmem:[#allocation12 + $0x78] sm:$0xff]
          %v498 = vld [vmem:[%s5] sm:$0x1]
          %v500 = vlaneseq
          %v501 = vshrl.u32 %v500, 7
          %v502 = vsub.s32 0, %v501
          %v503 = vrot.slane %v498, %v502
          %505 = vmatprep.subr.mxu0 0.0
          %506 = vmatpush1.msra.mxu0 %v482
          %507 = vmatprep.subr.mxu0 0.0
          %508 = vmatpush1.msra.mxu0 %v483
          %509 = vmatprep.subr.mxu0 0.0
          %510 = vmatpush1.msra.mxu0 %v484
          %511 = vmatprep.subr.mxu0 0.0
          %512 = vmatpush1.msra.mxu0 %v485
          %513 = vmatprep.subr.mxu0 0.0
          %514 = vmatpush1.msra.mxu0 %v486
          %515 = vmatprep.subr.mxu0 0.0
          %516 = vmatpush1.msra.mxu0 %v487
          %517 = vmatprep.subr.mxu0 0.0
          %518 = vmatpush1.msra.mxu0 %v488
          %519 = vmatprep.subr.mxu0 0.0
          %520 = vmatpush1.msra.mxu0 %v489
          %521 = vmatprep.subr.mxu0 0.0
          %522 = vmatpush1.msra.mxu0 %v490
          %523 = vmatprep.subr.mxu0 0.0
          %524 = vmatpush1.msra.mxu0 %v491
          %525 = vmatprep.subr.mxu0 0.0
          %526 = vmatpush1.msra.mxu0 %v492
          %527 = vmatprep.subr.mxu0 0.0
          %528 = vmatpush1.msra.mxu0 %v493
          %529 = vmatprep.subr.mxu0 0.0
          %530 = vmatpush1.msra.mxu0 %v494
          %531 = vmatprep.subr.mxu0 0.0
          %532 = vmatpush1.msra.mxu0 %v495
          %533 = vmatprep.subr.mxu0 0.0
          %534 = vmatpush1.msra.mxu0 %v496
          %535 = vmatprep.subr.mxu0 0.0
          %536 = vmatpush1.msra.mxu0 %v497
          %537 = vmatprep.subr.mxu0 0.0
          %538 = vmatpush1.msra.mxu0 0.0
          %539 = vmatprep.subr.mxu0 0.0
          %540 = vmatpush1.msra.mxu0 0.0
          %541 = vmatprep.subr.mxu0 0.0
          %542 = vmatpush1.msra.mxu0 0.0
          %543 = vmatprep.subr.mxu0 0.0
          %544 = vmatpush1.msra.mxu0 0.0
          %545 = vmatprep.subr.mxu0 0.0
          %546 = vmatpush1.msra.mxu0 0.0
          %547 = vmatprep.subr.mxu0 0.0
          %548 = vmatpush1.msra.mxu0 0.0
          %549 = vmatprep.subr.mxu0 0.0
          %550 = vmatpush1.msra.mxu0 0.0
          %551 = vmatprep.subr.mxu0 0.0
          %552 = vmatpush1.msra.mxu0 0.0
          %553 = vmatprep.subr.mxu0 0.0
          %554 = vmatpush1.msra.mxu0 0.0
          %555 = vmatprep.subr.mxu0 0.0
          %556 = vmatpush1.msra.mxu0 0.0
          %557 = vmatprep.subr.mxu0 0.0
          %558 = vmatpush1.msra.mxu0 0.0
          %559 = vmatprep.subr.mxu0 0.0
          %560 = vmatpush1.msra.mxu0 0.0
          %561 = vmatprep.subr.mxu0 0.0
          %562 = vmatpush1.msra.mxu0 0.0
          %563 = vmatprep.subr.mxu0 0.0
          %564 = vmatpush1.msra.mxu0 0.0
          %565 = vmatprep.subr.mxu0 0.0
          %566 = vmatpush1.msra.mxu0 0.0
          %567 = vmatprep.subr.mxu0 0.0
          %568 = vmatpush1.msra.mxu0 0.0
          %569 = vmatprep.mubr.f32.mxu0 0.0
          %570 = vmatmul.mubr.f32.gmra.mrb[0].mxu0 %v481
          %v571 = vpop.f32.mrb[0].mxu0
          %v572 = vadd.f32 %v503, %v571
          %v573 = vpop.f32.mrb[0].mxu0
          %574 = vdwg.mxu0
          %575 = vst [vmem:[%s315] sm:$0xff] %v572
        $region68: #{encoder_forward.1} parent=43 // pred_fallthru
          _
        %s576 = sand.u32 %s181, 1
        %s577 = scalar_lea.sflag [#allocation9], %s576
        %s578 = sand.u32 %s181, 1
        %s579 = smul.addr %s578, 8
        %s580 = scalar_lea.vmem [#allocation13], %s579
        // Predicated region
        $region73: #{encoder_forward.1} parent=43 // pred_check
          %p581 = pneg %p191
        $region74: #{encoder_forward.1} parent=43 // pred_check_branch
          %583 = sbr.rel (%p581) target = $region76
        $region75: #{encoder_forward.1} parent=43 // pred_region
          %s584 = smul.u32 %s29, %s28
          %s586 = ssub.s32 128, 128
          %587 = vsyncadd %s577, %s586
          %s588 = smul.addr %s584, 128
          %s589 = scalar_lea.hbm %s6, %s588
          %s591 = sshll.u32 %s580, 4
          %s592 = int_to_ptr.vmem [resolvable:$true] %s591
          %594 = dma.vmem_to_hbm [thread:$0]  %s592, 128, %s589, %s577
        $region76: #{encoder_forward.1} parent=43 // pred_fallthru
          _
      $region44: #{encoder_forward.1} parent=5 // pred_fallthru
        _
      %p595 = scmp.le.s32.totalorder 2, %s19
      // Predicated region
      $region77: #{encoder_forward.1} parent=5 // pred_check
        %p596 = pneg %p595
      $region78: #{encoder_forward.1} parent=5 // pred_check_branch
        %598 = sbr.rel (%p596) target = $region80
      $region79: #{encoder_forward.1} parent=5 // pred_region
        %s599 = ssub.s32 %s19, 2
        // Predicated region
        $region81: #{encoder_forward.1} parent=79 // pred_check
          %p600 = pneg %p197
        $region82: #{encoder_forward.1} parent=79 // pred_check_branch
          %602 = sbr.rel (%p600) target = $region84
        $region83: #{encoder_forward.1} parent=79 // pred_region
          %s603 = sand.u32 %s182, 1
          %s604 = scalar_lea.sflag [#allocation9], %s603
          %s605 = sand.u32 %s182, 1
          %s606 = smul.addr %s605, 8
          %s607 = scalar_lea.vmem [#allocation13], %s606
          %608 = dma.done %s604, 128
        $region84: #{encoder_forward.1} parent=79 // pred_fallthru
          _
      $region80: #{encoder_forward.1} parent=5 // pred_fallthru
        _
    $region6: #{encoder_forward.1} parent=1 // loop_footer
      %s23 = sadd.s32 1, %s19
    $region7: #{encoder_forward.1} parent=1 // loop_footer_branch
      %18 = sbr.rel target = $region3
    $region8: #{encoder_forward.1} parent=1 // loop_exit
      _
    %609 = vsyncpa [#allocation8], 1
    %s610 = scalar_lea.sflag [#allocation8], 1
    %611 = vsyncpa %s610, 1
    %612 = vsyncpa [#allocation11], 1
    %613 = vsyncpa [#allocation9], 1
    %s614 = scalar_lea.sflag [#allocation9], 1
    %615 = vsyncpa %s614, 1

</llo_original>
